<compile_context>
chip_gen: v7x
topology: tpu7x:2x2x1
jax: 0.10.0
libtpu: 0.0.40
codegen_flags: <defaults>
</compile_context>

<pallas_src>
import functools

import jax
import jax.numpy as jnp
from jax import lax
from jax.experimental import pallas as pl
from jax.experimental.pallas import tpu as pltpu


def _focal_ce_kernel(logits_ref, target_ref, loss_out_ref, cnt_out_ref, *,
                     gamma, ignore_label, hw):
    """One (batch, pixel-tile) grid step.

    logits_ref:  (C, T)  — classes on sublanes, pixels on lanes
    target_ref:  (1, T)  int32
    loss_out_ref / cnt_out_ref: (1, 1) per-(batch, tile) partial sums
    """
    C, T = logits_ref.shape
    t = pl.program_id(1)

    logits = logits_ref[...].astype(jnp.float32)         # (C, T); bf16 ok
    tgt = target_ref[...]                                # (1, T) int32

    # Softmax over the class (sublane) axis. All reductions are per-lane, so
    # garbage values in out-of-bounds tail lanes stay contained to those lanes.
    m = jnp.max(logits, axis=0, keepdims=True)           # (1, T)
    e = jnp.exp(logits - m)                              # (C, T)
    denom = jnp.sum(e, axis=0, keepdims=True)            # (1, T)

    # One-hot gather of the true class' exp value (classes on sublanes).
    # iota is only (C, 1); the compare broadcasts it along lanes instead of
    # materializing a full (C, T) iota every step.
    class_ids = lax.broadcasted_iota(jnp.int32, (C, 1), 0)
    tgt_idx = jnp.clip(tgt, 0, C - 1)                    # reference clamps gather index
    e_true = jnp.sum(jnp.where(class_ids == tgt_idx, e, 0.0),
                     axis=0, keepdims=True)              # (1, T)

    p_true = jnp.clip(e_true / denom, 1e-9, 1.0 - 1e-9)  # (1, T)

    valid = (tgt >= 0) & (tgt != ignore_label)
    if hw % T != 0:  # static check: only the ragged last tile needs the mask
        pos = t * T + lax.broadcasted_iota(jnp.int32, (1, T), 1)
        valid = valid & (pos < hw)

    # gamma stays a static Python int -> integer_pow (muls), not exp/log.
    loss = -((1.0 - p_true) ** gamma) * jnp.log(p_true)

    # Select-based masking (NOT multiply) so NaN/Inf from garbage tail logits
    # can never reach the accumulated sum.
    loss_out_ref[...] = jnp.sum(jnp.where(valid, loss, 0.0), keepdims=True)
    cnt_out_ref[...] = jnp.sum(jnp.where(valid, 1.0, 0.0), keepdims=True)


def cross_entropy_2d(predict, target, *, gamma=2, size_average=True,
                     ignore_label=255, max_tile=16384):
    N, C, H, W = predict.shape
    HW = H * W

    # Channels stay in place (no transpose, no pad): pure metadata reshape.
    # bf16 predict is accepted directly; the kernel upcasts per-tile.
    logits = predict.reshape(N, C, HW)
    tgt = target.reshape(N, 1, HW).astype(jnp.int32)

    # Fixed large tile (multiple of 128).  The ragged tail is masked in-kernel,
    # so H*W never forces tiny tiles or an extra full-tensor HBM pad pass.
    hw_padded = ((HW + 127) // 128) * 128
    tile = min(max_tile, hw_padded)
    n_tiles = pl.cdiv(HW, tile)

    kernel = functools.partial(_focal_ce_kernel, gamma=gamma,
                               ignore_label=ignore_label, hw=HW)
    loss_part, cnt_part = pl.pallas_call(
        kernel,
        out_shape=(jax.ShapeDtypeStruct((N, n_tiles, 1, 1), jnp.float32),
                   jax.ShapeDtypeStruct((N, n_tiles, 1, 1), jnp.float32)),
        grid_spec=pltpu.PrefetchScalarGridSpec(
            num_scalar_prefetch=0,
            grid=(N, n_tiles),
            in_specs=[pl.BlockSpec((None, C, tile), lambda n, t: (n, 0, t)),
                      pl.BlockSpec((None, 1, tile), lambda n, t: (n, 0, t))],
            out_specs=(pl.BlockSpec((None, None, 1, 1), lambda n, t: (n, t, 0, 0)),
                       pl.BlockSpec((None, None, 1, 1), lambda n, t: (n, t, 0, 0))),
        ),
        compiler_params=pltpu.CompilerParams(
            # Each (n, t) writes its own output block -> both axes independent.
            # On v7x this lets the pixel-tile axis split across both TCs even
            # when N == 1; on v5e/v6e it is neutral.
            dimension_semantics=("parallel", "parallel")),
    )(logits, tgt)

    loss_sum = jnp.sum(loss_part)
    count = jnp.sum(cnt_part)
    return loss_sum / count if size_average else loss_sum


class CrossEntropy2d:
    def __init__(self, class_num=19, alpha=None, gamma=2, size_average=True,
                 ignore_label=255):
        # Deterministic parameter init mirroring the PyTorch module.
        # alpha is stored but (as in the reference forward) never used.
        if alpha is None:
            self.alpha = jnp.ones((class_num, 1), jnp.float32)
        else:
            self.alpha = jnp.asarray(alpha, jnp.float32)
        self.gamma = gamma
        self.class_num = class_num
        self.size_average = size_average
        self.ignore_label = ignore_label

    def __call__(self, predict, target):
        return cross_entropy_2d(predict, target, gamma=self.gamma,
                                size_average=self.size_average,
                                ignore_label=self.ignore_label)


def _reference(predict, target, gamma=2, size_average=True, ignore_label=255):
    """Pure-JAX reference matching the PyTorch forward."""
    N, C, H, W = predict.shape
    p = jax.nn.softmax(predict, axis=1)
    p = jnp.clip(p, 1e-9, 1.0 - 1e-9)
    p = jnp.transpose(p, (0, 2, 3, 1)).reshape(-1, C)
    t = target.reshape(-1)
    valid = (t >= 0) & (t != ignore_label)
    idx = jnp.clip(t, 0, C - 1).astype(jnp.int32)[:, None]
    p_true = jnp.take_along_axis(p, idx, axis=1)[:, 0]
    loss = -((1.0 - p_true) ** gamma) * jnp.log(p_true)
    loss = jnp.where(valid, loss, 0.0)
    if size_average:
        return jnp.sum(loss) / jnp.sum(valid)
    return jnp.sum(loss)


if __name__ == "__main__":
    module = CrossEntropy2d(class_num=19)

    def run_case(key, N, C, H, W):
        k1, k2, k3 = jax.random.split(key, 3)
        predict = jax.random.normal(k1, (N, C, H, W), jnp.float32)
        target = jax.random.randint(k2, (N, H, W), 0, C).astype(jnp.int32)
        # sprinkle some ignore_label pixels to exercise masking
        ignore_mask = jax.random.uniform(k3, (N, H, W)) < 0.1
        target = jnp.where(ignore_mask, 255, target)

        loss = module(predict, target)
        loss = jax.block_until_ready(loss)

        ref = _reference(predict, target, gamma=module.gamma,
                         size_average=module.size_average,
                         ignore_label=module.ignore_label)
        assert jnp.allclose(loss, ref, rtol=1e-5, atol=1e-6), (N, C, H, W, loss, ref)

    key = jax.random.PRNGKey(0)
    k_a, k_b = jax.random.split(key)
    run_case(k_a, 2, 19, 16, 16)   # H*W multiple of 128: no tail mask needed
    run_case(k_b, 1, 19, 17, 17)   # ragged H*W: exercises in-kernel tail masking
    print("KERNEL_OK")
</pallas_src>

<mosaic_0001>
module attributes {stable_mosaic.version = 11 : i64} {
  func.func @_focal_ce_kernel(%arg0: i32, %arg1: i32, %arg2: memref<1x19x256xf32, #tpu.memory_space<vmem>>, %arg3: memref<1x1x256xi32, #tpu.memory_space<vmem>>, %arg4: memref<1x1x1x1xf32, #tpu.memory_space<vmem>>, %arg5: memref<1x1x1x1xf32, #tpu.memory_space<vmem>>) attributes {dimension_semantics = [#tpu.dimension_semantics<parallel>, #tpu.dimension_semantics<parallel>], iteration_bounds = array<i64: 2, 1>, scalar_prefetch = 0 : i64, scratch_operands = 0 : i64, tpu.core_type = #tpu.core_type<tc>, window_params = [{transform_indices = @transform_0, window_bounds = array<i64: 1, 19, 256>}, {transform_indices = @transform_1, window_bounds = array<i64: 1, 1, 256>}, {transform_indices = @transform_2, window_bounds = array<i64: 1, 1, 1, 1>}, {transform_indices = @transform_3, window_bounds = array<i64: 1, 1, 1, 1>}]} {
    %c0 = arith.constant 0 : index
    %c0_0 = arith.constant 0 : index
    %c0_1 = arith.constant 0 : index
    %0 = vector.load %arg2[%c0, %c0_0, %c0_1] : memref<1x19x256xf32, #tpu.memory_space<vmem>>, vector<1x19x256xf32>
    %1 = vector.shape_cast %0 : vector<1x19x256xf32> to vector<19x256xf32>
    %c0_2 = arith.constant 0 : index
    %c0_3 = arith.constant 0 : index
    %c0_4 = arith.constant 0 : index
    %2 = vector.load %arg3[%c0_2, %c0_3, %c0_4] : memref<1x1x256xi32, #tpu.memory_space<vmem>>, vector<1x1x256xi32>
    %3 = vector.shape_cast %2 : vector<1x1x256xi32> to vector<1x256xi32>
    %cst = arith.constant dense<0xFF800000> : vector<256xf32>
    %4 = vector.multi_reduction <maximumf>, %1, %cst [0] : vector<19x256xf32> to vector<256xf32>
    %5 = vector.shape_cast %4 : vector<256xf32> to vector<1x256xf32>
    %6 = vector.broadcast %5 : vector<1x256xf32> to vector<19x256xf32>
    %7 = arith.subf %1, %6 : vector<19x256xf32>
    %8 = math.exp %7 : vector<19x256xf32>
    %cst_5 = arith.constant dense<0.000000e+00> : vector<256xf32>
    %9 = vector.multi_reduction <add>, %8, %cst_5 [0] : vector<19x256xf32> to vector<256xf32>
    %10 = vector.shape_cast %9 : vector<256xf32> to vector<1x256xf32>
    %11 = tpu.iota {dimensions = array<i32: 0>} : vector<19x1xi32>
    %c0_i32 = arith.constant 0 : i32
    %c18_i32 = arith.constant 18 : i32
    %12 = vector.broadcast %c0_i32 : i32 to vector<1x256xi32>
    %13 = arith.maxsi %12, %3 : vector<1x256xi32>
    %14 = vector.broadcast %c18_i32 : i32 to vector<1x256xi32>
    %15 = arith.minsi %14, %13 : vector<1x256xi32>
    %16 = vector.broadcast %11 : vector<19x1xi32> to vector<19x256xi32>
    %17 = vector.broadcast %15 : vector<1x256xi32> to vector<19x256xi32>
    %18 = arith.cmpi eq, %16, %17 : vector<19x256xi32>
    %cst_6 = arith.constant 0.000000e+00 : f32
    %19 = vector.broadcast %cst_6 : f32 to vector<19x256xf32>
    %20 = arith.select %18, %8, %19 : vector<19x256xi1>, vector<19x256xf32>
    %cst_7 = arith.constant dense<0.000000e+00> : vector<256xf32>
    %21 = vector.multi_reduction <add>, %20, %cst_7 [0] : vector<19x256xf32> to vector<256xf32>
    %22 = vector.shape_cast %21 : vector<256xf32> to vector<1x256xf32>
    %23 = arith.divf %22, %10 : vector<1x256xf32>
    %cst_8 = arith.constant 9.99999971E-10 : f32
    %cst_9 = arith.constant 1.000000e+00 : f32
    %24 = vector.broadcast %cst_8 : f32 to vector<1x256xf32>
    %25 = arith.maximumf %24, %23 : vector<1x256xf32>
    %26 = vector.broadcast %cst_9 : f32 to vector<1x256xf32>
    %27 = arith.minimumf %26, %25 : vector<1x256xf32>
    %c0_i32_10 = arith.constant 0 : i32
    %28 = vector.broadcast %c0_i32_10 : i32 to vector<1x256xi32>
    %29 = arith.cmpi sge, %3, %28 : vector<1x256xi32>
    %c255_i32 = arith.constant 255 : i32
    %30 = vector.broadcast %c255_i32 : i32 to vector<1x256xi32>
    %31 = arith.cmpi ne, %3, %30 : vector<1x256xi32>
    %32 = arith.andi %29, %31 : vector<1x256xi1>
    %cst_11 = arith.constant 1.000000e+00 : f32
    %33 = vector.broadcast %cst_11 : f32 to vector<1x256xf32>
    %34 = arith.subf %33, %27 : vector<1x256xf32>
    %35 = arith.mulf %34, %34 : vector<1x256xf32>
    %cst_12 = arith.constant 0.000000e+00 : f32
    %36 = vector.broadcast %cst_12 : f32 to vector<1x256xf32>
    %37 = arith.subf %36, %35 : vector<1x256xf32>
    %38 = math.log %27 : vector<1x256xf32>
    %39 = arith.mulf %37, %38 : vector<1x256xf32>
    %cst_13 = arith.constant 0.000000e+00 : f32
    %40 = vector.broadcast %cst_13 : f32 to vector<1x256xf32>
    %41 = arith.select %32, %39, %40 : vector<1x256xi1>, vector<1x256xf32>
    %42 = vector.shape_cast %41 : vector<1x256xf32> to vector<1x1x256xf32>
    %cst_14 = arith.constant dense<0.000000e+00> : vector<1xf32>
    %43 = vector.multi_reduction <add>, %42, %cst_14 [1, 2] : vector<1x1x256xf32> to vector<1xf32>
    %44 = vector.shape_cast %43 : vector<1xf32> to vector<1x1x1xf32>
    %45 = vector.extract %44[0, 0, 0] : f32 from vector<1x1x1xf32>
    %46 = vector.broadcast %45 : f32 to vector<1x1xf32>
    %c0_15 = arith.constant 0 : index
    %c0_16 = arith.constant 0 : index
    %c0_17 = arith.constant 0 : index
    %c0_18 = arith.constant 0 : index
    %47 = vector.load %arg4[%c0_15, %c0_16, %c0_17, %c0_18] : memref<1x1x1x1xf32, #tpu.memory_space<vmem>>, vector<1x1x1x1xf32>
    %48 = vector.shape_cast %47 : vector<1x1x1x1xf32> to vector<1x1xf32>
    %49 = vector.shape_cast %46 : vector<1x1xf32> to vector<1x1x1x1xf32>
    tpu.vector_store %arg4[%c0_15, %c0_16, %c0_17, %c0_18], %49 {strides = array<i32>} : memref<1x1x1x1xf32, #tpu.memory_space<vmem>>, vector<1x1x1x1xf32>,
    %cst_19 = arith.constant 1.000000e+00 : f32
    %cst_20 = arith.constant 0.000000e+00 : f32
    %50 = vector.broadcast %cst_19 : f32 to vector<1x256xf32>
    %51 = vector.broadcast %cst_20 : f32 to vector<1x256xf32>
    %52 = arith.select %32, %50, %51 : vector<1x256xi1>, vector<1x256xf32>
    %53 = vector.shape_cast %52 : vector<1x256xf32> to vector<1x1x256xf32>
    %cst_21 = arith.constant dense<0.000000e+00> : vector<1xf32>
    %54 = vector.multi_reduction <add>, %53, %cst_21 [1, 2] : vector<1x1x256xf32> to vector<1xf32>
    %55 = vector.shape_cast %54 : vector<1xf32> to vector<1x1x1xf32>
    %56 = vector.extract %55[0, 0, 0] : f32 from vector<1x1x1xf32>
    %57 = vector.broadcast %56 : f32 to vector<1x1xf32>
    %c0_22 = arith.constant 0 : index
    %c0_23 = arith.constant 0 : index
    %c0_24 = arith.constant 0 : index
    %c0_25 = arith.constant 0 : index
    %58 = vector.load %arg5[%c0_22, %c0_23, %c0_24, %c0_25] : memref<1x1x1x1xf32, #tpu.memory_space<vmem>>, vector<1x1x1x1xf32>
    %59 = vector.shape_cast %58 : vector<1x1x1x1xf32> to vector<1x1xf32>
    %60 = vector.shape_cast %57 : vector<1x1xf32> to vector<1x1x1x1xf32>
    tpu.vector_store %arg5[%c0_22, %c0_23, %c0_24, %c0_25], %60 {strides = array<i32>} : memref<1x1x1x1xf32, #tpu.memory_space<vmem>>, vector<1x1x1x1xf32>,
    return
  }
  func.func @transform_0(%arg0: i32, %arg1: i32) -> (i32, i32, i32) {
    %c0_i32 = arith.constant 0 : i32
    %c0_i32_0 = arith.constant 0 : i32
    return %arg0, %c0_i32, %arg1 : i32, i32, i32
  }
  func.func @transform_1(%arg0: i32, %arg1: i32) -> (i32, i32, i32) {
    %c0_i32 = arith.constant 0 : i32
    %c0_i32_0 = arith.constant 0 : i32
    return %arg0, %c0_i32, %arg1 : i32, i32, i32
  }
  func.func @transform_2(%arg0: i32, %arg1: i32) -> (i32, i32, i32, i32) {
    %c0_i32 = arith.constant 0 : i32
    %c0_i32_0 = arith.constant 0 : i32
    %c0_i32_1 = arith.constant 0 : i32
    return %arg0, %arg1, %c0_i32, %c0_i32_0 : i32, i32, i32, i32
  }
  func.func @transform_3(%arg0: i32, %arg1: i32) -> (i32, i32, i32, i32) {
    %c0_i32 = arith.constant 0 : i32
    %c0_i32_0 = arith.constant 0 : i32
    %c0_i32_1 = arith.constant 0 : i32
    return %arg0, %arg1, %c0_i32, %c0_i32_0 : i32, i32, i32, i32
  }
}

</mosaic_0001>

<llo_original>
// kernel: tpu_custom_call.1
$region0: #{tpu_custom_call.1}
  #allocation0 [shape = 'u32[]', space=smem, size = 0x4, offset = 0x4, fixed_abs, tag = 'smem constant byte address 0x4 - core index']
  #allocation1 [shape = 'u32[144,128]{1,0:T(1,128)}', space=vmem, size = 0x12000, scoped, tag = 'internal scratch']
  %s0 = inlined_call_operand.vmem [shape: f32[2,19,256], index: 0, kind: input, shape index: {}]
  %s1 = inlined_call_operand.vmem [shape: s32[2,1,256], index: 1, kind: input, shape index: {}]
  %s2 = inlined_call_operand.vmem [shape: f32[2,1,1,1], index: 2, kind: output, shape index: {0}]
  %s3 = inlined_call_operand.vmem [shape: f32[2,1,1,1], index: 3, kind: output, shape index: {1}]
  %4 = xla_tuple %s2, %s3
  %s5 = sld [smem:[#allocation0]]
  $region49: #{tpu_custom_call.1} parent=0
    _
  %s7 = ssub.s32 1, %s5
  %s8 = scalar_select 0, %s7, %s5
  loop: start=0, step=1, limit=4
  $region2: #{tpu_custom_call.1} parent=0 // loop_pre_header
    _
  $region3: #{tpu_custom_call.1} parent=0 // loop_header
    %s10 = sphi 0, %s14
    %p11 = scmp.ge.s32.totalorder %s10, 4
    %s17 = sphi 0, %s29
    %s18 = sphi 0, %s25
    %s19 = sphi 0, %s17
    %s20 = sphi 0, %s18
    %s21 = sphi 0, %s19
    %s22 = sphi 0, %s20
    %s34 = sphi 0, %s36
    %s37 = sphi 0, %s34
    %s38 = sphi 0, %s37
    %s54 = sphi 0, %s38
    %s62 = sphi 0, %s64
    %s65 = sphi 0, %s62
    %s66 = sphi 0, %s65
    %s82 = sphi 0, %s66
    %s90 = sphi 0, %s92
    %s93 = sphi 0, %s90
    %s94 = sphi 0, %s93
    %s110 = sphi 0, %s94
    %s118 = sphi 0, %s120
    %s121 = sphi 0, %s118
    %s122 = sphi 0, %s121
    %s138 = sphi 0, %s122
  $region4: #{tpu_custom_call.1} parent=0 // loop_header_branch
    %13 = sbr.rel (%p11) target = $region8
  $region5: #{tpu_custom_call.1} parent=0 // loop_body
    %s15 = ssub.s32 %s10, 1
    %s16 = ssub.s32 %s10, 2
    %s23 = sadd.s32 1, %s18
    %p24 = scmp.ge.s32.totalorder %s23, 1
    %s25 = scalar_select %p24, 0, %s23
    %s26 = sadd.s32 1, %s17
    %s27 = scalar_select %p24, %s26, %s17
    %p28 = scmp.ge.s32.totalorder %s27, 2
    %s29 = scalar_select %p28, 0, %s27
    %s30 = ssub.s32 %s17, %s29
    %s31 = ssub.s32 %s18, %s25
    %s32 = sor.u32 %s30, %s31
    %p33 = scmp.eq.s32.totalorder %s32, 0
    %s35 = sadd.s32 %s34, 1
    %s36 = scalar_select %p33, %s34, %s35
    %p39 = pneg %p33
    %p40 = scmp.eq.s32.totalorder %s10, 1
    %p41 = por %p39, %p40
    %p42 = scmp.ne.s32.totalorder %s34, %s37
    %p43 = scmp.eq.s32.totalorder %s10, 0
    %p44 = por %p42, %p43
    %p45 = scmp.ne.s32.totalorder %s34, %s37
    %p46 = scmp.eq.s32.totalorder %s15, 1
    %p47 = por %p45, %p46
    %p48 = scmp.ne.s32.totalorder %s37, %s38
    %p49 = scmp.eq.s32.totalorder %s15, 0
    %p50 = por %p48, %p49
    %p51 = scmp.ne.s32.totalorder %s37, %s38
    %p52 = scmp.eq.s32.totalorder %s16, 1
    %p53 = por %p51, %p52
    %p55 = scmp.ne.s32.totalorder %s38, %s54
    %p56 = scmp.eq.s32.totalorder %s16, 0
    %p57 = por %p55, %p56
    %s58 = ssub.s32 %s17, %s29
    %s59 = ssub.s32 %s18, %s25
    %s60 = sor.u32 %s58, %s59
    %p61 = scmp.eq.s32.totalorder %s60, 0
    %s63 = sadd.s32 %s62, 1
    %s64 = scalar_select %p61, %s62, %s63
    %p67 = pneg %p61
    %p68 = scmp.eq.s32.totalorder %s10, 1
    %p69 = por %p67, %p68
    %p70 = scmp.ne.s32.totalorder %s62, %s65
    %p71 = scmp.eq.s32.totalorder %s10, 0
    %p72 = por %p70, %p71
    %p73 = scmp.ne.s32.totalorder %s62, %s65
    %p74 = scmp.eq.s32.totalorder %s15, 1
    %p75 = por %p73, %p74
    %p76 = scmp.ne.s32.totalorder %s65, %s66
    %p77 = scmp.eq.s32.totalorder %s15, 0
    %p78 = por %p76, %p77
    %p79 = scmp.ne.s32.totalorder %s65, %s66
    %p80 = scmp.eq.s32.totalorder %s16, 1
    %p81 = por %p79, %p80
    %p83 = scmp.ne.s32.totalorder %s66, %s82
    %p84 = scmp.eq.s32.totalorder %s16, 0
    %p85 = por %p83, %p84
    %s86 = ssub.s32 %s17, %s29
    %s87 = ssub.s32 %s18, %s25
    %s88 = sor.u32 %s86, %s87
    %p89 = scmp.eq.s32.totalorder %s88, 0
    %s91 = sadd.s32 %s90, 1
    %s92 = scalar_select %p89, %s90, %s91
    %p95 = pneg %p89
    %p96 = scmp.eq.s32.totalorder %s10, 1
    %p97 = por %p95, %p96
    %p98 = scmp.ne.s32.totalorder %s90, %s93
    %p99 = scmp.eq.s32.totalorder %s10, 0
    %p100 = por %p98, %p99
    %p101 = scmp.ne.s32.totalorder %s90, %s93
    %p102 = scmp.eq.s32.totalorder %s15, 1
    %p103 = por %p101, %p102
    %p104 = scmp.ne.s32.totalorder %s93, %s94
    %p105 = scmp.eq.s32.totalorder %s15, 0
    %p106 = por %p104, %p105
    %p107 = scmp.ne.s32.totalorder %s93, %s94
    %p108 = scmp.eq.s32.totalorder %s16, 1
    %p109 = por %p107, %p108
    %p111 = scmp.ne.s32.totalorder %s94, %s110
    %p112 = scmp.eq.s32.totalorder %s16, 0
    %p113 = por %p111, %p112
    %s114 = ssub.s32 %s17, %s29
    %s115 = ssub.s32 %s18, %s25
    %s116 = sor.u32 %s114, %s115
    %p117 = scmp.eq.s32.totalorder %s116, 0
    %s119 = sadd.s32 %s118, 1
    %s120 = scalar_select %p117, %s118, %s119
    %p123 = pneg %p117
    %p124 = scmp.eq.s32.totalorder %s10, 1
    %p125 = por %p123, %p124
    %p126 = scmp.ne.s32.totalorder %s118, %s121
    %p127 = scmp.eq.s32.totalorder %s10, 0
    %p128 = por %p126, %p127
    %p129 = scmp.ne.s32.totalorder %s118, %s121
    %p130 = scmp.eq.s32.totalorder %s15, 1
    %p131 = por %p129, %p130
    %p132 = scmp.ne.s32.totalorder %s121, %s122
    %p133 = scmp.eq.s32.totalorder %s15, 0
    %p134 = por %p132, %p133
    %p135 = scmp.ne.s32.totalorder %s121, %s122
    %p136 = scmp.eq.s32.totalorder %s16, 1
    %p137 = por %p135, %p136
    %p139 = scmp.ne.s32.totalorder %s122, %s138
    %p140 = scmp.eq.s32.totalorder %s16, 0
    %p141 = por %p139, %p140
    %p142 = scmp.le.s32.totalorder 1, %s10
    %p143 = scmp.lt.s32.totalorder %s10, 3
    %p144 = pnand %p142, %p143
    %p145 = pneg %p144
    // Predicated region
    $region9: #{tpu_custom_call.1} parent=5 // pred_check
      _
    $region10: #{tpu_custom_call.1} parent=5 // pred_check_branch
      %147 = sbr.rel (%p144) target = $region12
    $region11: #{tpu_custom_call.1} parent=5 // pred_region
      %s148 = ssub.s32 %s10, 1
    $region12: #{tpu_custom_call.1} parent=5 // pred_fallthru
      _
    %p149 = scmp.lt.s32.totalorder %s10, 2
    // Predicated region
    $region13: #{tpu_custom_call.1} parent=5 // pred_check
      %p150 = pneg %p149
    $region14: #{tpu_custom_call.1} parent=5 // pred_check_branch
      %152 = sbr.rel (%p150) target = $region16
    $region15: #{tpu_custom_call.1} parent=5 // pred_region
      // Predicated region
      $region17: #{tpu_custom_call.1} parent=15 // pred_check
        %p153 = pneg %p44
      $region18: #{tpu_custom_call.1} parent=15 // pred_check_branch
        %155 = sbr.rel (%p153) target = $region20
      $region19: #{tpu_custom_call.1} parent=15 // pred_region
        %s156 = smul.u32 2, %s18
        %p157 = scmp.lt.s32.totalorder %s17, 1
        %s158 = scalar_select %p157, %s17, 1
        %p159 = scmp.lt.s32.totalorder %s156, 1
        %s160 = scalar_select %p159, %s156, 1
        %s161 = smul.addr %s158, 6
        %s162 = sadd.s32 %s160, %s161
        %s163 = smul.addr %s162, 8
        %s164 = scalar_lea.vmem %s0, %s163
        %s165 = smul.u32 2, %s18
      $region20: #{tpu_custom_call.1} parent=15 // pred_fallthru
        _
      // Predicated region
      $region21: #{tpu_custom_call.1} parent=15 // pred_check
        %p166 = pneg %p72
      $region22: #{tpu_custom_call.1} parent=15 // pred_check_branch
        %168 = sbr.rel (%p166) target = $region24
      $region23: #{tpu_custom_call.1} parent=15 // pred_region
        %s169 = smul.u32 2, %s18
        %p170 = scmp.lt.s32.totalorder %s17, 1
        %s171 = scalar_select %p170, %s17, 1
        %p172 = scmp.lt.s32.totalorder %s169, 1
        %s173 = scalar_select %p172, %s169, 1
        %s174 = smul.addr %s171, 2
        %s175 = sadd.s32 %s173, %s174
        %s176 = scalar_lea.vmem %s1, %s175
        %s177 = smul.u32 2, %s18
      $region24: #{tpu_custom_call.1} parent=15 // pred_fallthru
        _
    $region16: #{tpu_custom_call.1} parent=5 // pred_fallthru
      _
    %p178 = scmp.le.s32.totalorder 1, %s10
    %p179 = scmp.lt.s32.totalorder %s10, 3
    %p180 = pnand %p178, %p179
    %p181 = pneg %p180
    // Predicated region
    $region25: #{tpu_custom_call.1} parent=5 // pred_check
      _
    $region26: #{tpu_custom_call.1} parent=5 // pred_check_branch
      %183 = sbr.rel (%p180) target = $region28
    $region27: #{tpu_custom_call.1} parent=5 // pred_region
      %s184 = ssub.s32 %s10, 1
      %s185 = smul.u32 2, %s20
      %p186 = scmp.lt.s32.totalorder %s19, 1
      %s187 = scalar_select %p186, %s19, 1
      %p188 = scmp.lt.s32.totalorder %s185, 1
      %s189 = scalar_select %p188, %s185, 1
      %s190 = smul.addr %s187, 6
      %s191 = sadd.s32 %s189, %s190
      %s192 = smul.addr %s191, 8
      %s193 = scalar_lea.vmem %s0, %s192
      %p194 = pneg %p50
      %p195 = pneg %p47
      %s196 = smul.u32 2, %s20
      %p197 = scmp.lt.s32.totalorder %s19, 1
      %s198 = scalar_select %p197, %s19, 1
      %p199 = scmp.lt.s32.totalorder %s196, 1
      %s200 = scalar_select %p199, %s196, 1
      %s201 = smul.addr %s198, 2
      %s202 = sadd.s32 %s200, %s201
      %s203 = scalar_lea.vmem %s1, %s202
      %p204 = pneg %p78
      %p205 = pneg %p75
      %p206 = pneg %p106
      %p207 = pneg %p103
      %p208 = scmp.lt.s32.totalorder %s19, 1
      %s209 = scalar_select %p208, %s19, 1
      %p210 = scmp.lt.s32.totalorder %s20, 0
      %s211 = scalar_select %p210, %s20, 0
      %s212 = sadd.s32 %s211, %s209
      %s213 = scalar_lea.vmem %s2, %s212
      %p214 = pneg %p134
      %p215 = pneg %p131
      %p216 = scmp.lt.s32.totalorder %s19, 1
      %s217 = scalar_select %p216, %s19, 1
      %p218 = scmp.lt.s32.totalorder %s20, 0
      %s219 = scalar_select %p218, %s20, 0
      %s220 = sadd.s32 %s219, %s217
      %s221 = scalar_lea.vmem %s3, %s220
      %s222 = smul.u32 2, %s20
      %p223 = scmp.lt.s32.totalorder %s19, 1
      %s224 = scalar_select %p223, %s19, 1
      %p225 = scmp.lt.s32.totalorder %s222, 1
      %s226 = scalar_select %p225, %s222, 1
      %s227 = smul.addr %s224, 6
      %s228 = sadd.s32 %s226, %s227
      %s229 = smul.addr %s228, 8
      %s230 = scalar_lea.vmem %s0, %s229
      %s231 = smul.u32 2, %s20
      %s232 = smul.u32 2, %s20
      %p233 = scmp.lt.s32.totalorder %s19, 1
      %s234 = scalar_select %p233, %s19, 1
      %p235 = scmp.lt.s32.totalorder %s232, 1
      %s236 = scalar_select %p235, %s232, 1
      %s237 = smul.addr %s234, 2
      %s238 = sadd.s32 %s236, %s237
      %s239 = scalar_lea.vmem %s1, %s238
      %s240 = smul.u32 2, %s20
      %p241 = scmp.lt.s32.totalorder %s19, 1
      %s242 = scalar_select %p241, %s19, 1
      %p243 = scmp.lt.s32.totalorder %s20, 0
      %s244 = scalar_select %p243, %s20, 0
      %s245 = sadd.s32 %s244, %s242
      %s246 = scalar_lea.vmem %s2, %s245
      %p247 = scmp.lt.s32.totalorder %s19, 1
      %s248 = scalar_select %p247, %s19, 1
      %p249 = scmp.lt.s32.totalorder %s20, 0
      %s250 = scalar_select %p249, %s20, 0
      %s251 = sadd.s32 %s250, %s248
      %s252 = scalar_lea.vmem %s3, %s251
      %v253 = vld [vmem:[%s230] sm:$0xff]
      %v254 = vld [vmem:[%s230 + $0x8] sm:$0xff]
      %v255 = vld [vmem:[%s230 + $0x10] sm:$0xff]
      %v256 = vld [vmem:[%s230 + $0x18] sm:$0xff]
      %v257 = vld [vmem:[%s230 + $0x20] sm:$0x7]
      %v258 = vld [vmem:[%s230 + $0x28] sm:$0x7]
      %v259 = vld [vmem:[%s239] sm:$0x3]
      %vm260 = vcmask 1042432
      %v261 = vsel %vm260, %v257, -inf
      %v262 = vmax.f32 %v253, %v261
      %v263 = vmax.f32 %v262, %v255
      %v264 = vrot.slane %v263, 4
      %v265 = vmax.f32 %v263, %v264
      %v266 = vrot.slane %v265, 2
      %v267 = vmax.f32 %v265, %v266
      %v268 = vrot.slane %v267, 1
      %v269 = vmax.f32 %v267, %v268
      %v270 = vsel %vm260, %v258, -inf
      %v271 = vmax.f32 %v254, %v270
      %v272 = vmax.f32 %v271, %v256
      %v273 = vrot.slane %v272, 4
      %v274 = vmax.f32 %v272, %v273
      %v275 = vrot.slane %v274, 2
      %v276 = vmax.f32 %v274, %v275
      %v277 = vrot.slane %v276, 1
      %v278 = vmax.f32 %v276, %v277
      %v279 = vsub.f32 %v253, %v269
      %v280 = vsub.f32 %v254, %v278
      %v281 = vsub.f32 %v255, %v269
      %v282 = vsub.f32 %v256, %v278
      %v283 = vsub.f32 %v257, %v269
      %v284 = vsub.f32 %v258, %v278
      %v285 = vmul.f32 %v279, 1.442695
      %v286 = vpow.pop %v285
      %v287 = vmul.f32 %v280, 1.442695
      %v288 = vpow.pop %v287
      %v289 = vmul.f32 %v281, 1.442695
      %v290 = vpow.pop %v289
      %v291 = vmul.f32 %v282, 1.442695
      %v292 = vpow.pop %v291
      %v293 = vmul.f32 %v283, 1.442695
      %v294 = vpow.pop %v293
      %v295 = vmul.f32 %v284, 1.442695
      %v296 = vpow.pop %v295
      %v297 = vadd.f32 %v286, %v290
      %v298 = vsel %vm260, %v294, 0.0
      %v299 = vadd.f32 %v297, %v298
      %v300 = vrot.slane %v299, 4
      %v301 = vadd.f32 %v299, %v300
      %v302 = vrot.slane %v301, 2
      %v303 = vadd.f32 %v301, %v302
      %v304 = vrot.slane %v303, 1
      %v305 = vadd.f32 %v303, %v304
      %v306 = vadd.f32 %v288, %v292
      %v307 = vsel %vm260, %v296, 0.0
      %v308 = vadd.f32 %v306, %v307
      %v309 = vrot.slane %v308, 4
      %v310 = vadd.f32 %v308, %v309
      %v311 = vrot.slane %v310, 2
      %v312 = vadd.f32 %v310, %v311
      %v313 = vrot.slane %v312, 1
      %v314 = vadd.f32 %v312, %v313
      %v315 = vlaneseq
      %v316 = vshrl.u32 %v315, 7
      %v317 = vadd.s32 %v316, 8
      %v318 = vadd.s32 %v316, 16
      %vm319 = vcmp.gt.s32.totalorder %v259, 0
      %v320 = vsel %vm319, %v259, 0
      %vm321 = vcmp.lt.s32.totalorder %v320, 18
      %v322 = vsel %vm321, %v320, 18
      %v323 = vlaneseq
      %v324 = vshrl.u32 %v323, 7
      %v325 = vsub.s32 0, %v324
      %v326 = vrot.slane %v322, %v325
      %v327 = vlaneseq
      %v328 = vshrl.u32 %v327, 7
      %v329 = vsub.s32 1, %v328
      %v330 = vrot.slane %v322, %v329
      %vm331 = vcmp.eq.s32.totalorder %v316, %v326
      %vm332 = vcmp.eq.s32.totalorder %v316, %v330
      %vm333 = vcmp.eq.s32.totalorder %v317, %v326
      %vm334 = vcmp.eq.s32.totalorder %v317, %v330
      %vm335 = vcmp.eq.s32.totalorder %v318, %v326
      %vm336 = vcmp.eq.s32.totalorder %v318, %v330
      %v337 = vsel %vm331, %v286, 0.0
      %v338 = vsel %vm332, %v288, 0.0
      %v339 = vsel %vm333, %v290, 0.0
      %v340 = vsel %vm334, %v292, 0.0
      %v341 = vsel %vm335, %v294, 0.0
      %v342 = vsel %vm336, %v296, 0.0
      %v343 = vadd.f32 %v337, %v339
      %v344 = vsel %vm260, %v341, 0.0
      %v345 = vadd.f32 %v343, %v344
      %v346 = vrot.slane %v345, 4
      %v347 = vadd.f32 %v345, %v346
      %v348 = vrot.slane %v347, 2
      %v349 = vadd.f32 %v347, %v348
      %v350 = vrot.slane %v349, 1
      %v351 = vadd.f32 %v349, %v350
      %v352 = vadd.f32 %v338, %v340
      %v353 = vsel %vm260, %v342, 0.0
      %v354 = vadd.f32 %v352, %v353
      %v355 = vrot.slane %v354, 4
      %v356 = vadd.f32 %v354, %v355
      %v357 = vrot.slane %v356, 2
      %v358 = vadd.f32 %v356, %v357
      %v359 = vrot.slane %v358, 1
      %v360 = vadd.f32 %v358, %v359
      %v361 = vrcp.pop %v305
      %v362 = vmul.f32 %v351, %v361
      %v363 = vrcp.pop %v314
      %v364 = vmul.f32 %v360, %v363
      %v365 = vmax.f32 %v362, 1e-09
      %v366 = vmax.f32 %v364, 1e-09
      %v367 = vmin.f32 %v365, 1.0
      %v368 = vmin.f32 %v366, 1.0
      %vm369 = vcmp.ge.s32.totalorder %v259, 0
      %vm370 = vcmp.ne.s32.totalorder %v259, 255
      %vm371 = vmand %vm369, %vm370
      %v372 = vsub.f32 1.0, %v367
      %v373 = vsub.f32 1.0, %v368
      %v374 = vmul.f32 %v372, %v372
      %v375 = vmul.f32 %v373, %v373
      %v376 = vsub.f32 0.0, %v374
      %v377 = vsub.f32 0.0, %v375
      %v378 = vlog2.pop %v367
      %v379 = vmul.f32 %v378, 0.6931472
      %v380 = vlog2.pop %v368
      %v381 = vmul.f32 %v380, 0.6931472
      %v382 = vmul.f32 %v376, %v379
      %v383 = vmul.f32 %v377, %v381
      %v386 = vcombine.low %v382, %v383
      %v388 = vunpack.c.l.s4 1966171168
      %v389 = vunpack.c.0.s8 %v388
      %v390 = vlaneseq
      %v391 = vshrl.u32 %v390, 7
      %v392 = vsub.s32 %v389, %v391
      %v393 = vrot.slane %v386, %v392
      %v395 = vunpack.c.l.s4 1966171168
      %v396 = vunpack.c.0.s8 %v395
      %v397 = vlaneseq
      %v398 = vshrl.u32 %v397, 7
      %v399 = vsub.s32 %v396, %v398
      %v400 = vrot.slane %v393, %v399
      %v402 = vsel %vm371, %v400, 0.0
      %v404 = vlaneseq
      %v405 = vshrl.u32 %v404, 7
      %v406 = vsub.s32 0, %v405
      %v407 = vrot.slane %v402, %v406
      %v408 = vlaneseq
      %v409 = vshrl.u32 %v408, 7
      %v410 = vsub.s32 1, %v409
      %v411 = vrot.slane %v402, %v410
      %vm414 = vcmask 1040384
      %v415 = vsel %vm414, %v407, 0.0
      %v416 = vsel %vm414, %v411, 0.0
      %v417 = vadd.f32 %v415, %v416
      %418 = vadd.xlane.f32.xlu0 %v417
      %v419 = vpop.xlane.xlu0 %418
      %v420 = vrot.slane %v419, 4
      %v421 = vadd.f32 %v419, %v420
      %v422 = vrot.slane %v421, 2
      %v423 = vadd.f32 %v421, %v422
      %v424 = vrot.slane %v423, 1
      %v425 = vadd.f32 %v423, %v424
      %s426 = vtos %v425
      %v427 = vstv %s426
      %vm428 = vcmask 0
      %429 = vst.msk [vmem:[%s246] sm:$0x1] %vm428, %v427
      %v430 = vsel %vm371, 1.0, 0.0
      %v432 = vlaneseq
      %v433 = vshrl.u32 %v432, 7
      %v434 = vsub.s32 0, %v433
      %v435 = vrot.slane %v430, %v434
      %v436 = vlaneseq
      %v437 = vshrl.u32 %v436, 7
      %v438 = vsub.s32 1, %v437
      %v439 = vrot.slane %v430, %v438
      %v442 = vsel %vm414, %v435, 0.0
      %v443 = vsel %vm414, %v439, 0.0
      %v444 = vadd.f32 %v442, %v443
      %445 = vadd.xlane.f32.xlu0 %v444
      %v446 = vpop.xlane.xlu0 %445
      %v447 = vrot.slane %v446, 4
      %v448 = vadd.f32 %v446, %v447
      %v449 = vrot.slane %v448, 2
      %v450 = vadd.f32 %v448, %v449
      %v451 = vrot.slane %v450, 1
      %v452 = vadd.f32 %v450, %v451
      %s453 = vtos %v452
      %v454 = vstv %s453
      %455 = vst.msk [vmem:[%s252] sm:$0x1] %vm428, %v454
      %p456 = scmp.lt.s32.totalorder %s19, 1
      %s457 = scalar_select %p456, %s19, 1
      %p458 = scmp.lt.s32.totalorder %s20, 0
      %s459 = scalar_select %p458, %s20, 0
      %s460 = sadd.s32 %s459, %s457
      %s461 = scalar_lea.vmem %s2, %s460
      %p462 = scmp.lt.s32.totalorder %s19, 1
      %s463 = scalar_select %p462, %s19, 1
      %p464 = scmp.lt.s32.totalorder %s20, 0
      %s465 = scalar_select %p464, %s20, 0
      %s466 = sadd.s32 %s465, %s463
      %s467 = scalar_lea.vmem %s3, %s466
      // Predicated region
      $region29: #{tpu_custom_call.1} parent=27 // pred_check
        %p468 = pneg %p103
      $region30: #{tpu_custom_call.1} parent=27 // pred_check_branch
        %470 = sbr.rel (%p468) target = $region32
      $region31: #{tpu_custom_call.1} parent=27 // pred_region
        _
      $region32: #{tpu_custom_call.1} parent=27 // pred_fallthru
        _
      // Predicated region
      $region33: #{tpu_custom_call.1} parent=27 // pred_check
        %p471 = pneg %p131
      $region34: #{tpu_custom_call.1} parent=27 // pred_check_branch
        %473 = sbr.rel (%p471) target = $region36
      $region35: #{tpu_custom_call.1} parent=27 // pred_region
        _
      $region36: #{tpu_custom_call.1} parent=27 // pred_fallthru
        _
    $region28: #{tpu_custom_call.1} parent=5 // pred_fallthru
      _
    %p474 = scmp.le.s32.totalorder 2, %s10
    // Predicated region
    $region37: #{tpu_custom_call.1} parent=5 // pred_check
      %p475 = pneg %p474
    $region38: #{tpu_custom_call.1} parent=5 // pred_check_branch
      %477 = sbr.rel (%p475) target = $region40
    $region39: #{tpu_custom_call.1} parent=5 // pred_region
      %s478 = ssub.s32 %s10, 2
      // Predicated region
      $region41: #{tpu_custom_call.1} parent=39 // pred_check
        %p479 = pneg %p109
      $region42: #{tpu_custom_call.1} parent=39 // pred_check_branch
        %481 = sbr.rel (%p479) target = $region44
      $region43: #{tpu_custom_call.1} parent=39 // pred_region
        %p482 = scmp.lt.s32.totalorder %s21, 1
        %s483 = scalar_select %p482, %s21, 1
        %p484 = scmp.lt.s32.totalorder %s22, 0
        %s485 = scalar_select %p484, %s22, 0
        %s486 = sadd.s32 %s485, %s483
        %s487 = scalar_lea.vmem %s2, %s486
      $region44: #{tpu_custom_call.1} parent=39 // pred_fallthru
        _
      // Predicated region
      $region45: #{tpu_custom_call.1} parent=39 // pred_check
        %p488 = pneg %p137
      $region46: #{tpu_custom_call.1} parent=39 // pred_check_branch
        %490 = sbr.rel (%p488) target = $region48
      $region47: #{tpu_custom_call.1} parent=39 // pred_region
        %p491 = scmp.lt.s32.totalorder %s21, 1
        %s492 = scalar_select %p491, %s21, 1
        %p493 = scmp.lt.s32.totalorder %s22, 0
        %s494 = scalar_select %p493, %s22, 0
        %s495 = sadd.s32 %s494, %s492
        %s496 = scalar_lea.vmem %s3, %s495
      $region48: #{tpu_custom_call.1} parent=39 // pred_fallthru
        _
    $region40: #{tpu_custom_call.1} parent=5 // pred_fallthru
      _
  $region6: #{tpu_custom_call.1} parent=0 // loop_footer
    %s14 = sadd.s32 1, %s10
  $region7: #{tpu_custom_call.1} parent=0 // loop_footer_branch
    %9 = sbr.rel target = $region3
  $region8: #{tpu_custom_call.1} parent=0 // loop_exit
    _

</llo_original>
